<compile_context>
chip_gen: v7x
topology: tpu7x:2x2x1
jax: 0.10.0
libtpu: 0.0.40
codegen_flags: <defaults>
</compile_context>

<pallas_src>
import functools

import jax
import jax.numpy as jnp
from jax import lax
from jax.experimental import pallas as pl
from jax.experimental.pallas import tpu as pltpu


def _sdpa_core(q, k, v, bias_f32, inv_scale):
    """q,k,v: (G, L, D) in native dtype; bias_f32: (G, Lq, Lk) f32 or None."""
    # scores = q @ k^T with f32 accumulation; operands stay native dtype (MXU rate).
    s = lax.dot_general(
        q, k,
        dimension_numbers=(((2,), (2,)), ((0,), (0,))),
        preferred_element_type=jnp.float32,
    )
    s = s * inv_scale
    if bias_f32 is not None:
        s = s + bias_f32

    # numerically-stable softmax over the last axis (f32 on VPU/EUP)
    m = jnp.max(s, axis=-1, keepdims=True)
    e = jnp.exp(s - m)
    denom = jnp.sum(e, axis=-1, keepdims=True)
    attn = e * pl.reciprocal(denom, approx=True)   # EUP vrcp — free slot

    # out = attn @ v ; probabilities cast back to v.dtype for the MXU
    out = lax.dot_general(
        attn.astype(v.dtype), v,
        dimension_numbers=(((2,), (1,)), ((0,), (0,))),
        preferred_element_type=jnp.float32,
    )
    return out, attn


def _sdpa_kernel_bias(q_ref, k_ref, v_ref, bias_ref, out_ref, attn_ref, *, inv_scale):
    out, attn = _sdpa_core(
        q_ref[...], k_ref[...], v_ref[...],
        bias_ref[...].astype(jnp.float32), inv_scale)
    out_ref[...] = out.astype(out_ref.dtype)
    attn_ref[...] = attn.astype(attn_ref.dtype)


def _sdpa_kernel_nobias(q_ref, k_ref, v_ref, out_ref, attn_ref, *, inv_scale):
    out, attn = _sdpa_core(q_ref[...], k_ref[...], v_ref[...], None, inv_scale)
    out_ref[...] = out.astype(out_ref.dtype)
    attn_ref[...] = attn.astype(attn_ref.dtype)


def _choose_group(BH, Lq, Lk, D, itemsize, with_bias, budget_bytes=28 * 1024 * 1024):
    """Largest divisor G of BH whose (double-buffered) block working set fits budget.

    Keeps >= 2 grid steps when possible so both v7x TensorCores get work; the
    budget is conservative enough for v7x's 64 MiB VMEM.
    """
    best = 1
    for g in range(1, BH + 1):
        if BH % g:
            continue
        if BH >= 2 and BH // g < 2:
            continue  # expose at least 2 parallel steps for megacore
        io = 2 * itemsize * (2 * g * Lq * D + 2 * g * Lk * D
                             + (2 if with_bias else 1) * g * Lq * Lk)
        scratch = 4 * (3 * g * Lq * Lk + 2 * g * Lq * D)  # f32 intermediates
        if io + scratch <= budget_bytes:
            best = g
    return best


def scaled_dot_product_attention(q, k, v, bias=None, *, scale, dropout=0.0):
    """q: [B,H,Lq,D], k: [B,H,Lk,D], v: [B,H,Lk,D], bias: broadcastable to [B,H,Lq,Lk]."""
    B, H, Lq, D = q.shape
    Lk = k.shape[2]
    BH = B * H

    qf = q.reshape(BH, Lq, D)
    kf = k.reshape(BH, Lk, D)
    vf = v.reshape(BH, Lk, D)

    with_bias = bias is not None
    itemsize = jnp.dtype(q.dtype).itemsize
    G = _choose_group(BH, Lq, Lk, D, itemsize, with_bias)
    grid = (BH // G,)
    inv_scale = 1.0 / float(scale)

    out_shape = (
        jax.ShapeDtypeStruct((BH, Lq, D), q.dtype),
        jax.ShapeDtypeStruct((BH, Lq, Lk), q.dtype),
    )
    out_specs = [
        pl.BlockSpec((G, Lq, D), lambda i: (i, 0, 0)),
        pl.BlockSpec((G, Lq, Lk), lambda i: (i, 0, 0)),
    ]
    compiler_params = pltpu.CompilerParams(
        dimension_semantics=("parallel",),
        vmem_limit_bytes=48 * 1024 * 1024,
    )

    if with_bias:
        bf = jnp.broadcast_to(bias, (B, H, Lq, Lk)).reshape(BH, Lq, Lk)
        kernel = functools.partial(_sdpa_kernel_bias, inv_scale=inv_scale)
        in_specs = [
            pl.BlockSpec((G, Lq, D), lambda i: (i, 0, 0)),
            pl.BlockSpec((G, Lk, D), lambda i: (i, 0, 0)),
            pl.BlockSpec((G, Lk, D), lambda i: (i, 0, 0)),
            pl.BlockSpec((G, Lq, Lk), lambda i: (i, 0, 0)),
        ]
        args = (qf, kf, vf, bf)
    else:
        kernel = functools.partial(_sdpa_kernel_nobias, inv_scale=inv_scale)
        in_specs = [
            pl.BlockSpec((G, Lq, D), lambda i: (i, 0, 0)),
            pl.BlockSpec((G, Lk, D), lambda i: (i, 0, 0)),
            pl.BlockSpec((G, Lk, D), lambda i: (i, 0, 0)),
        ]
        args = (qf, kf, vf)

    out, attn = pl.pallas_call(
        kernel,
        out_shape=out_shape,
        grid_spec=pltpu.PrefetchScalarGridSpec(
            num_scalar_prefetch=0,
            grid=grid,
            in_specs=in_specs,
            out_specs=out_specs,
        ),
        compiler_params=compiler_params,
    )(*args)

    return out.reshape(B, H, Lq, D), attn.reshape(B, H, Lq, Lk)


def _reference(q, k, v, bias, scale):
    s = jnp.einsum("bhqd,bhkd->bhqk", q / scale, k)
    if bias is not None:
        s = s + bias
    attn = jax.nn.softmax(s, axis=-1)
    out = jnp.einsum("bhqk,bhkd->bhqd", attn, v)
    return out, attn


if __name__ == "__main__":
    B, H, Lq, Lk, D = 2, 4, 8, 8, 32
    scale = float(D) ** 0.5
    dropout = 0.0  # nn.Dropout is identity at eval / p=0

    key = jax.random.PRNGKey(0)
    kq, kk, kv, kb = jax.random.split(key, 4)
    q = jax.random.normal(kq, (B, H, Lq, D), dtype=jnp.float32)
    k = jax.random.normal(kk, (B, H, Lk, D), dtype=jnp.float32)
    v = jax.random.normal(kv, (B, H, Lk, D), dtype=jnp.float32)
    bias = 0.1 * jax.random.normal(kb, (B, H, Lq, Lk), dtype=jnp.float32)

    # with-bias path
    out, attn = scaled_dot_product_attention(q, k, v, bias, scale=scale, dropout=dropout)
    out = jax.block_until_ready(out)
    attn = jax.block_until_ready(attn)
    ref_out, ref_attn = _reference(q, k, v, bias, scale)
    # tolerance relaxed slightly because of the approximate (EUP) reciprocal
    assert jnp.allclose(out, ref_out, atol=2e-3, rtol=2e-3), "output mismatch (bias)"
    assert jnp.allclose(attn, ref_attn, atol=2e-3, rtol=2e-3), "attn mismatch (bias)"

    # no-bias (specialized) path
    out2, attn2 = scaled_dot_product_attention(q, k, v, None, scale=scale, dropout=dropout)
    out2 = jax.block_until_ready(out2)
    attn2 = jax.block_until_ready(attn2)
    ref_out2, ref_attn2 = _reference(q, k, v, None, scale)
    assert jnp.allclose(out2, ref_out2, atol=2e-3, rtol=2e-3), "output mismatch (no bias)"
    assert jnp.allclose(attn2, ref_attn2, atol=2e-3, rtol=2e-3), "attn mismatch (no bias)"

    print("KERNEL_OK")
</pallas_src>

<mosaic_0001>
module attributes {stable_mosaic.version = 11 : i64} {
  func.func @_sdpa_kernel_bias(%arg0: i32, %arg1: memref<4x8x32xf32, #tpu.memory_space<vmem>>, %arg2: memref<4x8x32xf32, #tpu.memory_space<vmem>>, %arg3: memref<4x8x32xf32, #tpu.memory_space<vmem>>, %arg4: memref<4x8x8xf32, #tpu.memory_space<vmem>>, %arg5: memref<4x8x32xf32, #tpu.memory_space<vmem>>, %arg6: memref<4x8x8xf32, #tpu.memory_space<vmem>>) attributes {dimension_semantics = [#tpu.dimension_semantics<parallel>], iteration_bounds = array<i64: 2>, scalar_prefetch = 0 : i64, scratch_operands = 0 : i64, tpu.core_type = #tpu.core_type<tc>, window_params = [{transform_indices = @transform_0, window_bounds = array<i64: 4, 8, 32>}, {transform_indices = @transform_1, window_bounds = array<i64: 4, 8, 32>}, {transform_indices = @transform_2, window_bounds = array<i64: 4, 8, 32>}, {transform_indices = @transform_3, window_bounds = array<i64: 4, 8, 8>}, {transform_indices = @transform_4, window_bounds = array<i64: 4, 8, 32>}, {transform_indices = @transform_5, window_bounds = array<i64: 4, 8, 8>}]} {
    %c0 = arith.constant 0 : index
    %c0_0 = arith.constant 0 : index
    %c0_1 = arith.constant 0 : index
    %0 = vector.load %arg1[%c0, %c0_0, %c0_1] : memref<4x8x32xf32, #tpu.memory_space<vmem>>, vector<4x8x32xf32>
    %c0_2 = arith.constant 0 : index
    %c0_3 = arith.constant 0 : index
    %c0_4 = arith.constant 0 : index
    %1 = vector.load %arg2[%c0_2, %c0_3, %c0_4] : memref<4x8x32xf32, #tpu.memory_space<vmem>>, vector<4x8x32xf32>
    %c0_5 = arith.constant 0 : index
    %c0_6 = arith.constant 0 : index
    %c0_7 = arith.constant 0 : index
    %2 = vector.load %arg3[%c0_5, %c0_6, %c0_7] : memref<4x8x32xf32, #tpu.memory_space<vmem>>, vector<4x8x32xf32>
    %c0_8 = arith.constant 0 : index
    %c0_9 = arith.constant 0 : index
    %c0_10 = arith.constant 0 : index
    %3 = vector.load %arg4[%c0_8, %c0_9, %c0_10] : memref<4x8x8xf32, #tpu.memory_space<vmem>>, vector<4x8x8xf32>
    %cst = arith.constant dense<0.000000e+00> : vector<4x8x8xf32>
    %4 = tpu.matmul %0, %1, %cst {dimension_numbers = #tpu.dot_dimension_numbers<[2], [2], [1], [1], [0, 0, 0, 1, 1, 1], [0], [0]>} : vector<4x8x32xf32>, vector<4x8x32xf32>, vector<4x8x8xf32> -> vector<4x8x8xf32>
    %cst_11 = arith.constant 0.176776692 : f32
    %5 = vector.broadcast %cst_11 : f32 to vector<4x8x8xf32>
    %6 = arith.mulf %4, %5 : vector<4x8x8xf32>
    %7 = arith.addf %6, %3 : vector<4x8x8xf32>
    %cst_12 = arith.constant dense<0xFF800000> : vector<4x8xf32>
    %8 = vector.multi_reduction <maximumf>, %7, %cst_12 [2] : vector<4x8x8xf32> to vector<4x8xf32>
    %9 = vector.shape_cast %8 : vector<4x8xf32> to vector<4x8x1xf32>
    %10 = vector.broadcast %9 : vector<4x8x1xf32> to vector<4x8x8xf32>
    %11 = arith.subf %7, %10 : vector<4x8x8xf32>
    %12 = math.exp %11 : vector<4x8x8xf32>
    %cst_13 = arith.constant dense<0.000000e+00> : vector<4x8xf32>
    %13 = vector.multi_reduction <add>, %12, %cst_13 [2] : vector<4x8x8xf32> to vector<4x8xf32>
    %14 = vector.shape_cast %13 : vector<4x8xf32> to vector<4x8x1xf32>
    %15 = tpu.reciprocal %14 {approx = true} : vector<4x8x1xf32> -> vector<4x8x1xf32>
    %16 = vector.broadcast %15 : vector<4x8x1xf32> to vector<4x8x8xf32>
    %17 = arith.mulf %12, %16 : vector<4x8x8xf32>
    %cst_14 = arith.constant dense<0.000000e+00> : vector<4x8x32xf32>
    %18 = tpu.matmul %17, %2, %cst_14 {dimension_numbers = #tpu.dot_dimension_numbers<[2], [1], [1], [2], [0, 0, 0, 1, 1, 2], [0], [0]>} : vector<4x8x8xf32>, vector<4x8x32xf32>, vector<4x8x32xf32> -> vector<4x8x32xf32>
    %c0_15 = arith.constant 0 : index
    %c0_16 = arith.constant 0 : index
    %c0_17 = arith.constant 0 : index
    %19 = vector.load %arg5[%c0_15, %c0_16, %c0_17] : memref<4x8x32xf32, #tpu.memory_space<vmem>>, vector<4x8x32xf32>
    tpu.vector_store %arg5[%c0_15, %c0_16, %c0_17], %18 {strides = array<i32>} : memref<4x8x32xf32, #tpu.memory_space<vmem>>, vector<4x8x32xf32>,
    %c0_18 = arith.constant 0 : index
    %c0_19 = arith.constant 0 : index
    %c0_20 = arith.constant 0 : index
    %20 = vector.load %arg6[%c0_18, %c0_19, %c0_20] : memref<4x8x8xf32, #tpu.memory_space<vmem>>, vector<4x8x8xf32>
    tpu.vector_store %arg6[%c0_18, %c0_19, %c0_20], %17 {strides = array<i32>} : memref<4x8x8xf32, #tpu.memory_space<vmem>>, vector<4x8x8xf32>,
    return
  }
  func.func @transform_0(%arg0: i32) -> (i32, i32, i32) {
    %c0_i32 = arith.constant 0 : i32
    %c0_i32_0 = arith.constant 0 : i32
    %c0_i32_1 = arith.constant 0 : i32
    return %arg0, %c0_i32, %c0_i32_0 : i32, i32, i32
  }
  func.func @transform_1(%arg0: i32) -> (i32, i32, i32) {
    %c0_i32 = arith.constant 0 : i32
    %c0_i32_0 = arith.constant 0 : i32
    %c0_i32_1 = arith.constant 0 : i32
    return %arg0, %c0_i32, %c0_i32_0 : i32, i32, i32
  }
  func.func @transform_2(%arg0: i32) -> (i32, i32, i32) {
    %c0_i32 = arith.constant 0 : i32
    %c0_i32_0 = arith.constant 0 : i32
    %c0_i32_1 = arith.constant 0 : i32
    return %arg0, %c0_i32, %c0_i32_0 : i32, i32, i32
  }
  func.func @transform_3(%arg0: i32) -> (i32, i32, i32) {
    %c0_i32 = arith.constant 0 : i32
    %c0_i32_0 = arith.constant 0 : i32
    %c0_i32_1 = arith.constant 0 : i32
    return %arg0, %c0_i32, %c0_i32_0 : i32, i32, i32
  }
  func.func @transform_4(%arg0: i32) -> (i32, i32, i32) {
    %c0_i32 = arith.constant 0 : i32
    %c0_i32_0 = arith.constant 0 : i32
    %c0_i32_1 = arith.constant 0 : i32
    return %arg0, %c0_i32, %c0_i32_0 : i32, i32, i32
  }
  func.func @transform_5(%arg0: i32) -> (i32, i32, i32) {
    %c0_i32 = arith.constant 0 : i32
    %c0_i32_0 = arith.constant 0 : i32
    %c0_i32_1 = arith.constant 0 : i32
    return %arg0, %c0_i32, %c0_i32_0 : i32, i32, i32
  }
}

</mosaic_0001>

<llo_original>
// kernel: tpu_custom_call.1
$region0: #{tpu_custom_call.1}
  #allocation0 [shape = 'u32[]', space=smem, size = 0x4, offset = 0x4, fixed_abs, tag = 'smem constant byte address 0x4 - core index']
  #allocation1 [shape = 'u32[144,128]{1,0:T(1,128)}', space=vmem, size = 0x12000, scoped, tag = 'internal scratch']
  %s0 = inlined_call_operand.hbm [shape: f32[8,8,32], index: 0, kind: input, shape index: {}]
  %s1 = inlined_call_operand.hbm [shape: f32[8,8,32], index: 1, kind: input, shape index: {}]
  %s2 = inlined_call_operand.hbm [shape: f32[8,8,32], index: 2, kind: input, shape index: {}]
  %s3 = inlined_call_operand.hbm [shape: f32[8,8,8], index: 3, kind: input, shape index: {}]
  %s4 = inlined_call_operand.hbm [shape: f32[8,8,32], index: 4, kind: output, shape index: {0}]
  %s5 = inlined_call_operand.hbm [shape: f32[8,8,8], index: 5, kind: output, shape index: {1}]
  %6 = xla_tuple %s4, %s5
  %s7 = sld [smem:[#allocation0]]
  $region73: #{tpu_custom_call.1} parent=0
    _
  %s9 = ssub.s32 1, %s7
  %s10 = scalar_select 0, %s9, %s7
  $region1: #{tpu_custom_call.1} parent=0
    #allocation2 [shape = 'u8[32768]{0}', space=vmem, size = 0x8000, scoped, tag = 'input window, operand 0']
    #allocation3 [shape = 's32[2]{0}', space=sflag, size = 0x8, scoped, tag = 'scoped memory for tpu_custom_call.1']
    #allocation4 [shape = 's32[2]{0}', space=sflag, size = 0x8, scoped, tag = 'scoped memory for tpu_custom_call.1']
    #allocation5 [shape = 'u8[32768]{0}', space=vmem, size = 0x8000, scoped, tag = 'input window, operand 1']
    #allocation6 [shape = 's32[2]{0}', space=sflag, size = 0x8, scoped, tag = 'scoped memory for tpu_custom_call.1']
    #allocation7 [shape = 'u8[32768]{0}', space=vmem, size = 0x8000, scoped, tag = 'input window, operand 2']
    #allocation8 [shape = 'u8[32768]{0}', space=vmem, size = 0x8000, scoped, tag = 'input window, operand 3']
    #allocation9 [shape = 's32[2]{0}', space=sflag, size = 0x8, scoped, tag = 'scoped memory for tpu_custom_call.1']
    #allocation10 [shape = 'u8[32768]{0}', space=vmem, size = 0x8000, scoped, tag = 'output window, operand 0']
    #allocation11 [shape = 'u8[32768]{0}', space=vmem, size = 0x8000, scoped, tag = 'output window, operand 1']
    #allocation12 [shape = 's32[2]{0}', space=sflag, size = 0x8, scoped, tag = 'scoped memory for tpu_custom_call.1']
    %11 = vsyncpa [#allocation3], 0
    %s12 = scalar_lea.sflag [#allocation3], 1
    %13 = vsyncpa %s12, 0
    %14 = vsyncpa [#allocation6], 0
    %s15 = scalar_lea.sflag [#allocation6], 1
    %16 = vsyncpa %s15, 0
    %17 = vsyncpa [#allocation9], 0
    %s18 = scalar_lea.sflag [#allocation9], 1
    %19 = vsyncpa %s18, 0
    %20 = vsyncpa [#allocation4], 0
    %s21 = scalar_lea.sflag [#allocation4], 1
    %22 = vsyncpa %s21, 0
    %23 = vsyncpa [#allocation12], 0
    %s24 = scalar_lea.sflag [#allocation12], 1
    %25 = vsyncpa %s24, 0
    loop: start=0, step=1, limit=4
    $region2: #{tpu_custom_call.1} parent=1 // loop_pre_header
      _
    $region3: #{tpu_custom_call.1} parent=1 // loop_header
      %s27 = sphi 0, %s31
      %p28 = scmp.ge.s32.totalorder %s27, 4
      %s37 = sphi 0, %s39
      %s40 = sphi 0, %s37
      %s41 = sphi 0, %s40
      %s57 = sphi 0, %s41
      %s63 = sphi 0, %s65
      %s66 = sphi 0, %s63
      %s67 = sphi 0, %s66
      %s83 = sphi 0, %s67
      %s89 = sphi 0, %s91
      %s92 = sphi 0, %s89
      %s93 = sphi 0, %s92
      %s109 = sphi 0, %s93
      %s115 = sphi 0, %s117
      %s118 = sphi 0, %s115
      %s119 = sphi 0, %s118
      %s135 = sphi 0, %s119
      %s141 = sphi 0, %s143
      %s144 = sphi 0, %s141
      %s145 = sphi 0, %s144
      %s161 = sphi 0, %s145
      %s167 = sphi 0, %s169
      %s170 = sphi 0, %s167
      %s171 = sphi 0, %s170
      %s187 = sphi 0, %s171
    $region4: #{tpu_custom_call.1} parent=1 // loop_header_branch
      %30 = sbr.rel (%p28) target = $region8
    $region5: #{tpu_custom_call.1} parent=1 // loop_body
      %s32 = ssub.s32 %s27, 1
      %s33 = ssub.s32 %s27, 2
      %s34 = sadd.s32 %s27, 1
      %s35 = ssub.s32 %s27, %s34
      %p36 = scmp.eq.s32.totalorder %s35, 0
      %s38 = sadd.s32 %s37, 1
      %s39 = scalar_select %p36, %s37, %s38
      %p42 = pneg %p36
      %p43 = scmp.eq.s32.totalorder %s27, 1
      %p44 = por %p42, %p43
      %p45 = scmp.ne.s32.totalorder %s37, %s40
      %p46 = scmp.eq.s32.totalorder %s27, 0
      %p47 = por %p45, %p46
      %p48 = scmp.ne.s32.totalorder %s37, %s40
      %p49 = scmp.eq.s32.totalorder %s32, 1
      %p50 = por %p48, %p49
      %p51 = scmp.ne.s32.totalorder %s40, %s41
      %p52 = scmp.eq.s32.totalorder %s32, 0
      %p53 = por %p51, %p52
      %p54 = scmp.ne.s32.totalorder %s40, %s41
      %p55 = scmp.eq.s32.totalorder %s33, 1
      %p56 = por %p54, %p55
      %p58 = scmp.ne.s32.totalorder %s41, %s57
      %p59 = scmp.eq.s32.totalorder %s33, 0
      %p60 = por %p58, %p59
      %s61 = ssub.s32 %s27, %s34
      %p62 = scmp.eq.s32.totalorder %s61, 0
      %s64 = sadd.s32 %s63, 1
      %s65 = scalar_select %p62, %s63, %s64
      %p68 = pneg %p62
      %p69 = scmp.eq.s32.totalorder %s27, 1
      %p70 = por %p68, %p69
      %p71 = scmp.ne.s32.totalorder %s63, %s66
      %p72 = scmp.eq.s32.totalorder %s27, 0
      %p73 = por %p71, %p72
      %p74 = scmp.ne.s32.totalorder %s63, %s66
      %p75 = scmp.eq.s32.totalorder %s32, 1
      %p76 = por %p74, %p75
      %p77 = scmp.ne.s32.totalorder %s66, %s67
      %p78 = scmp.eq.s32.totalorder %s32, 0
      %p79 = por %p77, %p78
      %p80 = scmp.ne.s32.totalorder %s66, %s67
      %p81 = scmp.eq.s32.totalorder %s33, 1
      %p82 = por %p80, %p81
      %p84 = scmp.ne.s32.totalorder %s67, %s83
      %p85 = scmp.eq.s32.totalorder %s33, 0
      %p86 = por %p84, %p85
      %s87 = ssub.s32 %s27, %s34
      %p88 = scmp.eq.s32.totalorder %s87, 0
      %s90 = sadd.s32 %s89, 1
      %s91 = scalar_select %p88, %s89, %s90
      %p94 = pneg %p88
      %p95 = scmp.eq.s32.totalorder %s27, 1
      %p96 = por %p94, %p95
      %p97 = scmp.ne.s32.totalorder %s89, %s92
      %p98 = scmp.eq.s32.totalorder %s27, 0
      %p99 = por %p97, %p98
      %p100 = scmp.ne.s32.totalorder %s89, %s92
      %p101 = scmp.eq.s32.totalorder %s32, 1
      %p102 = por %p100, %p101
      %p103 = scmp.ne.s32.totalorder %s92, %s93
      %p104 = scmp.eq.s32.totalorder %s32, 0
      %p105 = por %p103, %p104
      %p106 = scmp.ne.s32.totalorder %s92, %s93
      %p107 = scmp.eq.s32.totalorder %s33, 1
      %p108 = por %p106, %p107
      %p110 = scmp.ne.s32.totalorder %s93, %s109
      %p111 = scmp.eq.s32.totalorder %s33, 0
      %p112 = por %p110, %p111
      %s113 = ssub.s32 %s27, %s34
      %p114 = scmp.eq.s32.totalorder %s113, 0
      %s116 = sadd.s32 %s115, 1
      %s117 = scalar_select %p114, %s115, %s116
      %p120 = pneg %p114
      %p121 = scmp.eq.s32.totalorder %s27, 1
      %p122 = por %p120, %p121
      %p123 = scmp.ne.s32.totalorder %s115, %s118
      %p124 = scmp.eq.s32.totalorder %s27, 0
      %p125 = por %p123, %p124
      %p126 = scmp.ne.s32.totalorder %s115, %s118
      %p127 = scmp.eq.s32.totalorder %s32, 1
      %p128 = por %p126, %p127
      %p129 = scmp.ne.s32.totalorder %s118, %s119
      %p130 = scmp.eq.s32.totalorder %s32, 0
      %p131 = por %p129, %p130
      %p132 = scmp.ne.s32.totalorder %s118, %s119
      %p133 = scmp.eq.s32.totalorder %s33, 1
      %p134 = por %p132, %p133
      %p136 = scmp.ne.s32.totalorder %s119, %s135
      %p137 = scmp.eq.s32.totalorder %s33, 0
      %p138 = por %p136, %p137
      %s139 = ssub.s32 %s27, %s34
      %p140 = scmp.eq.s32.totalorder %s139, 0
      %s142 = sadd.s32 %s141, 1
      %s143 = scalar_select %p140, %s141, %s142
      %p146 = pneg %p140
      %p147 = scmp.eq.s32.totalorder %s27, 1
      %p148 = por %p146, %p147
      %p149 = scmp.ne.s32.totalorder %s141, %s144
      %p150 = scmp.eq.s32.totalorder %s27, 0
      %p151 = por %p149, %p150
      %p152 = scmp.ne.s32.totalorder %s141, %s144
      %p153 = scmp.eq.s32.totalorder %s32, 1
      %p154 = por %p152, %p153
      %p155 = scmp.ne.s32.totalorder %s144, %s145
      %p156 = scmp.eq.s32.totalorder %s32, 0
      %p157 = por %p155, %p156
      %p158 = scmp.ne.s32.totalorder %s144, %s145
      %p159 = scmp.eq.s32.totalorder %s33, 1
      %p160 = por %p158, %p159
      %p162 = scmp.ne.s32.totalorder %s145, %s161
      %p163 = scmp.eq.s32.totalorder %s33, 0
      %p164 = por %p162, %p163
      %s165 = ssub.s32 %s27, %s34
      %p166 = scmp.eq.s32.totalorder %s165, 0
      %s168 = sadd.s32 %s167, 1
      %s169 = scalar_select %p166, %s167, %s168
      %p172 = pneg %p166
      %p173 = scmp.eq.s32.totalorder %s27, 1
      %p174 = por %p172, %p173
      %p175 = scmp.ne.s32.totalorder %s167, %s170
      %p176 = scmp.eq.s32.totalorder %s27, 0
      %p177 = por %p175, %p176
      %p178 = scmp.ne.s32.totalorder %s167, %s170
      %p179 = scmp.eq.s32.totalorder %s32, 1
      %p180 = por %p178, %p179
      %p181 = scmp.ne.s32.totalorder %s170, %s171
      %p182 = scmp.eq.s32.totalorder %s32, 0
      %p183 = por %p181, %p182
      %p184 = scmp.ne.s32.totalorder %s170, %s171
      %p185 = scmp.eq.s32.totalorder %s33, 1
      %p186 = por %p184, %p185
      %p188 = scmp.ne.s32.totalorder %s171, %s187
      %p189 = scmp.eq.s32.totalorder %s33, 0
      %p190 = por %p188, %p189
      %p191 = scmp.le.s32.totalorder 1, %s27
      %p192 = scmp.lt.s32.totalorder %s27, 3
      %p193 = pnand %p191, %p192
      %p194 = pneg %p193
      // Predicated region
      $region9: #{tpu_custom_call.1} parent=5 // pred_check
        _
      $region10: #{tpu_custom_call.1} parent=5 // pred_check_branch
        %196 = sbr.rel (%p193) target = $region12
      $region11: #{tpu_custom_call.1} parent=5 // pred_region
        %s197 = ssub.s32 %s27, 1
      $region12: #{tpu_custom_call.1} parent=5 // pred_fallthru
        _
      %p198 = scmp.lt.s32.totalorder %s27, 2
      // Predicated region
      $region13: #{tpu_custom_call.1} parent=5 // pred_check
        %p199 = pneg %p198
      $region14: #{tpu_custom_call.1} parent=5 // pred_check_branch
        %201 = sbr.rel (%p199) target = $region16
      $region15: #{tpu_custom_call.1} parent=5 // pred_region
        // Predicated region
        $region17: #{tpu_custom_call.1} parent=15 // pred_check
          %p202 = pneg %p47
        $region18: #{tpu_custom_call.1} parent=15 // pred_check_branch
          %204 = sbr.rel (%p202) target = $region20
        $region19: #{tpu_custom_call.1} parent=15 // pred_region
          %s205 = sand.u32 %s37, 1
          %s206 = scalar_lea.sflag [#allocation3], %s205
          %s207 = sand.u32 %s37, 1
          %s208 = smul.addr %s207, 32
          %s209 = scalar_lea.vmem [#allocation2], %s208
          %s210 = smul.u32 4, %s27
          %s212 = ssub.s32 512, 512
          %213 = vsyncadd %s206, %s212
          %s214 = smul.addr %s210, 128
          %s215 = scalar_lea.hbm %s0, %s214
          %s216 = sshll.u32 %s209, 4
          %s217 = int_to_ptr.vmem [resolvable:$true] %s216
          %222 = dma.hbm_to_vmem [thread:$0]  %s215, 512, %s217, %s206, 128, 128, 8
        $region20: #{tpu_custom_call.1} parent=15 // pred_fallthru
          _
        // Predicated region
        $region21: #{tpu_custom_call.1} parent=15 // pred_check
          %p223 = pneg %p73
        $region22: #{tpu_custom_call.1} parent=15 // pred_check_branch
          %225 = sbr.rel (%p223) target = $region24
        $region23: #{tpu_custom_call.1} parent=15 // pred_region
          %s226 = sand.u32 %s27, 1
          %s227 = scalar_lea.sflag [#allocation6], %s226
          %s228 = sand.u32 %s63, 1
          %s229 = smul.addr %s228, 32
          %s230 = scalar_lea.vmem [#allocation5], %s229
          %s231 = smul.u32 4, %s27
          %s233 = ssub.s32 512, 512
          %234 = vsyncadd %s227, %s233
          %s235 = smul.addr %s231, 128
          %s236 = scalar_lea.hbm %s1, %s235
          %s237 = sshll.u32 %s230, 4
          %s238 = int_to_ptr.vmem [resolvable:$true] %s237
          %243 = dma.hbm_to_vmem [thread:$0]  %s236, 512, %s238, %s227, 128, 128, 8
        $region24: #{tpu_custom_call.1} parent=15 // pred_fallthru
          _
        // Predicated region
        $region25: #{tpu_custom_call.1} parent=15 // pred_check
          %p244 = pneg %p99
        $region26: #{tpu_custom_call.1} parent=15 // pred_check_branch
          %246 = sbr.rel (%p244) target = $region28
        $region27: #{tpu_custom_call.1} parent=15 // pred_region
          %s247 = sand.u32 %s27, 1
          %s248 = scalar_lea.sflag [#allocation6], %s247
          %s249 = sand.u32 %s89, 1
          %s250 = smul.addr %s249, 32
          %s251 = scalar_lea.vmem [#allocation7], %s250
          %s252 = smul.u32 4, %s27
          %s254 = ssub.s32 512, 512
          %255 = vsyncadd %s248, %s254
          %s256 = smul.addr %s252, 128
          %s257 = scalar_lea.hbm %s2, %s256
          %s258 = sshll.u32 %s251, 4
          %s259 = int_to_ptr.vmem [resolvable:$true] %s258
          %264 = dma.hbm_to_vmem [thread:$0]  %s257, 512, %s259, %s248, 128, 128, 8
        $region28: #{tpu_custom_call.1} parent=15 // pred_fallthru
          _
        // Predicated region
        $region29: #{tpu_custom_call.1} parent=15 // pred_check
          %p265 = pneg %p125
        $region30: #{tpu_custom_call.1} parent=15 // pred_check_branch
          %267 = sbr.rel (%p265) target = $region32
        $region31: #{tpu_custom_call.1} parent=15 // pred_region
          %s268 = sand.u32 %s115, 1
          %s269 = scalar_lea.sflag [#allocation9], %s268
          %s270 = sand.u32 %s115, 1
          %s271 = smul.addr %s270, 32
          %s272 = scalar_lea.vmem [#allocation8], %s271
          %s273 = smul.u32 4, %s27
          %s275 = ssub.s32 512, 512
          %276 = vsyncadd %s269, %s275
          %s277 = smul.addr %s273, 128
          %s278 = scalar_lea.hbm %s3, %s277
          %s279 = sshll.u32 %s272, 4
          %s280 = int_to_ptr.vmem [resolvable:$true] %s279
          %285 = dma.hbm_to_vmem [thread:$0]  %s278, 512, %s280, %s269, 128, 128, 8
        $region32: #{tpu_custom_call.1} parent=15 // pred_fallthru
          _
      $region16: #{tpu_custom_call.1} parent=5 // pred_fallthru
        _
      %p286 = scmp.le.s32.totalorder 1, %s27
      %p287 = scmp.lt.s32.totalorder %s27, 3
      %p288 = pnand %p286, %p287
      %p289 = pneg %p288
      // Predicated region
      $region33: #{tpu_custom_call.1} parent=5 // pred_check
        _
      $region34: #{tpu_custom_call.1} parent=5 // pred_check_branch
        %291 = sbr.rel (%p288) target = $region36
      $region35: #{tpu_custom_call.1} parent=5 // pred_region
        %s292 = ssub.s32 %s27, 1
        %s293 = sand.u32 %s40, 1
        %s294 = scalar_lea.sflag [#allocation3], %s293
        %s295 = sand.u32 %s40, 1
        %s296 = smul.addr %s295, 32
        %s297 = scalar_lea.vmem [#allocation2], %s296
        // Predicated region
        $region37: #{tpu_custom_call.1} parent=35 // pred_check
          %p298 = pneg %p53
        $region38: #{tpu_custom_call.1} parent=35 // pred_check_branch
          %300 = sbr.rel (%p298) target = $region40
        $region39: #{tpu_custom_call.1} parent=35 // pred_region
          %301 = dma.done %s294, 512
        $region40: #{tpu_custom_call.1} parent=35 // pred_fallthru
          _
        %s302 = sand.u32 %s32, 1
        %s303 = scalar_lea.sflag [#allocation6], %s302
        %s304 = sand.u32 %s66, 1
        %s305 = smul.addr %s304, 32
        %s306 = scalar_lea.vmem [#allocation5], %s305
        // Predicated region
        $region41: #{tpu_custom_call.1} parent=35 // pred_check
          %p307 = pneg %p79
        $region42: #{tpu_custom_call.1} parent=35 // pred_check_branch
          %309 = sbr.rel (%p307) target = $region44
        $region43: #{tpu_custom_call.1} parent=35 // pred_region
          %310 = dma.done %s303, 512
        $region44: #{tpu_custom_call.1} parent=35 // pred_fallthru
          _
        %s311 = sand.u32 %s32, 1
        %s312 = scalar_lea.sflag [#allocation6], %s311
        %s313 = sand.u32 %s92, 1
        %s314 = smul.addr %s313, 32
        %s315 = scalar_lea.vmem [#allocation7], %s314
        // Predicated region
        $region45: #{tpu_custom_call.1} parent=35 // pred_check
          %p316 = pneg %p105
        $region46: #{tpu_custom_call.1} parent=35 // pred_check_branch
          %318 = sbr.rel (%p316) target = $region48
        $region47: #{tpu_custom_call.1} parent=35 // pred_region
          %319 = dma.done %s312, 512
        $region48: #{tpu_custom_call.1} parent=35 // pred_fallthru
          _
        %s320 = sand.u32 %s118, 1
        %s321 = scalar_lea.sflag [#allocation9], %s320
        %s322 = sand.u32 %s118, 1
        %s323 = smul.addr %s322, 32
        %s324 = scalar_lea.vmem [#allocation8], %s323
        // Predicated region
        $region49: #{tpu_custom_call.1} parent=35 // pred_check
          %p325 = pneg %p131
        $region50: #{tpu_custom_call.1} parent=35 // pred_check_branch
          %327 = sbr.rel (%p325) target = $region52
        $region51: #{tpu_custom_call.1} parent=35 // pred_region
          %328 = dma.done %s321, 512
        $region52: #{tpu_custom_call.1} parent=35 // pred_fallthru
          _
        %s329 = sand.u32 %s40, 1
        %s330 = scalar_lea.sflag [#allocation3], %s329
        %s331 = sand.u32 %s40, 1
        %s332 = smul.addr %s331, 32
        %s333 = scalar_lea.vmem [#allocation2], %s332
        %p334 = pneg %p53
        %p335 = pneg %p50
        %s336 = sand.u32 %s32, 1
        %s337 = scalar_lea.sflag [#allocation6], %s336
        %s338 = sand.u32 %s66, 1
        %s339 = smul.addr %s338, 32
        %s340 = scalar_lea.vmem [#allocation5], %s339
        %p341 = pneg %p79
        %p342 = pneg %p76
        %s343 = sand.u32 %s32, 1
        %s344 = scalar_lea.sflag [#allocation6], %s343
        %s345 = sand.u32 %s92, 1
        %s346 = smul.addr %s345, 32
        %s347 = scalar_lea.vmem [#allocation7], %s346
        %p348 = pneg %p105
        %p349 = pneg %p102
        %s350 = sand.u32 %s118, 1
        %s351 = scalar_lea.sflag [#allocation9], %s350
        %s352 = sand.u32 %s118, 1
        %s353 = smul.addr %s352, 32
        %s354 = scalar_lea.vmem [#allocation8], %s353
        %p355 = pneg %p131
        %p356 = pneg %p128
        %p357 = pneg %p157
        %p358 = pneg %p154
        %s359 = sand.u32 %s144, 1
        %s360 = scalar_lea.sflag [#allocation4], %s359
        %s361 = sand.u32 %s144, 1
        %s362 = smul.addr %s361, 32
        %s363 = scalar_lea.vmem [#allocation10], %s362
        %p364 = pneg %p183
        %p365 = pneg %p180
        %s366 = sand.u32 %s170, 1
        %s367 = scalar_lea.sflag [#allocation12], %s366
        %s368 = sand.u32 %s170, 1
        %s369 = smul.addr %s368, 32
        %s370 = scalar_lea.vmem [#allocation11], %s369
        %s371 = smul.u32 4, %s32
        %s372 = smul.u32 4, %s32
        %s373 = smul.u32 4, %s32
        %s374 = smul.u32 4, %s32
        %s375 = smul.u32 4, %s32
        %s376 = smul.u32 4, %s32
        %v377 = vld [vmem:[%s297] sm:$0xff]
        %v378 = vld [vmem:[%s297 + $0x8] sm:$0xff]
        %v379 = vld [vmem:[%s297 + $0x10] sm:$0xff]
        %v380 = vld [vmem:[%s297 + $0x18] sm:$0xff]
        %v381 = vld [vmem:[%s306] sm:$0xff]
        %v382 = vld [vmem:[%s306 + $0x8] sm:$0xff]
        %v383 = vld [vmem:[%s306 + $0x10] sm:$0xff]
        %v384 = vld [vmem:[%s306 + $0x18] sm:$0xff]
        %v385 = vld [vmem:[%s315] sm:$0xff]
        %v386 = vld [vmem:[%s315 + $0x8] sm:$0xff]
        %v387 = vld [vmem:[%s315 + $0x10] sm:$0xff]
        %v388 = vld [vmem:[%s315 + $0x18] sm:$0xff]
        %v389 = vld [vmem:[%s324] sm:$0xff]
        %v390 = vld [vmem:[%s324 + $0x8] sm:$0xff]
        %v391 = vld [vmem:[%s324 + $0x10] sm:$0xff]
        %v392 = vld [vmem:[%s324 + $0x18] sm:$0xff]
        %vm393 = vcmask 261120
        %v395 = vsel %vm393, %v377, 0
        %v398 = vsel %vm393, %v381, 0
        %400 = vmatprep.subr.mxu0 0.0
        %401 = vmatpush1.xpose.msra.mxu0 %v398
        %402 = vmatprep.subr.mxu0 0.0
        %403 = vmatpush1.xpose.msra.mxu0 0.0
        %404 = vmatprep.subr.mxu0 0.0
        %405 = vmatpush1.xpose.msra.mxu0 0.0
        %406 = vmatprep.subr.mxu0 0.0
        %407 = vmatpush1.xpose.msra.mxu0 0.0
        %408 = vmatprep.subr.mxu0 0.0
        %409 = vmatpush1.xpose.msra.mxu0 0.0
        %410 = vmatprep.subr.mxu0 0.0
        %411 = vmatpush1.xpose.msra.mxu0 0.0
        %412 = vmatprep.subr.mxu0 0.0
        %413 = vmatpush1.xpose.msra.mxu0 0.0
        %414 = vmatprep.subr.mxu0 0.0
        %415 = vmatpush1.xpose.msra.mxu0 0.0
        %416 = vmatprep.subr.mxu0 0.0
        %417 = vmatpush1.xpose.msra.mxu0 0.0
        %418 = vmatprep.subr.mxu0 0.0
        %419 = vmatpush1.xpose.msra.mxu0 0.0
        %420 = vmatprep.subr.mxu0 0.0
        %421 = vmatpush1.xpose.msra.mxu0 0.0
        %422 = vmatprep.subr.mxu0 0.0
        %423 = vmatpush1.xpose.msra.mxu0 0.0
        %424 = vmatprep.subr.mxu0 0.0
        %425 = vmatpush1.xpose.msra.mxu0 0.0
        %426 = vmatprep.subr.mxu0 0.0
        %427 = vmatpush1.xpose.msra.mxu0 0.0
        %428 = vmatprep.subr.mxu0 0.0
        %429 = vmatpush1.xpose.msra.mxu0 0.0
        %430 = vmatprep.subr.mxu0 0.0
        %431 = vmatpush1.xpose.msra.mxu0 0.0
        %432 = vmatprep.subr.mxu0 0.0
        %433 = vmatpush1.xpose.msra.mxu0 0.0
        %434 = vmatprep.subr.mxu0 0.0
        %435 = vmatpush1.xpose.msra.mxu0 0.0
        %436 = vmatprep.subr.mxu0 0.0
        %437 = vmatpush1.xpose.msra.mxu0 0.0
        %438 = vmatprep.subr.mxu0 0.0
        %439 = vmatpush1.xpose.msra.mxu0 0.0
        %440 = vmatprep.subr.mxu0 0.0
        %441 = vmatpush1.xpose.msra.mxu0 0.0
        %442 = vmatprep.subr.mxu0 0.0
        %443 = vmatpush1.xpose.msra.mxu0 0.0
        %444 = vmatprep.subr.mxu0 0.0
        %445 = vmatpush1.xpose.msra.mxu0 0.0
        %446 = vmatprep.subr.mxu0 0.0
        %447 = vmatpush1.xpose.msra.mxu0 0.0
        %448 = vmatprep.subr.mxu0 0.0
        %449 = vmatpush1.xpose.msra.mxu0 0.0
        %450 = vmatprep.subr.mxu0 0.0
        %451 = vmatpush1.xpose.msra.mxu0 0.0
        %452 = vmatprep.subr.mxu0 0.0
        %453 = vmatpush1.xpose.msra.mxu0 0.0
        %454 = vmatprep.subr.mxu0 0.0
        %455 = vmatpush1.xpose.msra.mxu0 0.0
        %456 = vmatprep.subr.mxu0 0.0
        %457 = vmatpush1.xpose.msra.mxu0 0.0
        %458 = vmatprep.subr.mxu0 0.0
        %459 = vmatpush1.xpose.msra.mxu0 0.0
        %460 = vmatprep.subr.mxu0 0.0
        %461 = vmatpush1.xpose.msra.mxu0 0.0
        %462 = vmatprep.subr.mxu0 0.0
        %463 = vmatpush1.xpose.msra.mxu0 0.0
        %464 = vmatprep.mubr.f32.mxu0 0.0
        %465 = vmatmul.mubr.f32.gmra.mrb[0].mxu0 %v395
        %v466 = vpop.f32.mrb[0].mxu0
        %v467 = vadd.f32 0.0, %v466
        %v468 = vpop.f32.mrb[0].mxu0
        %469 = vdwg.mxu0
        %v471 = vsel %vm393, %v378, 0
        %v474 = vsel %vm393, %v382, 0
        %476 = vmatprep.subr.mxu0 0.0
        %477 = vmatpush1.xpose.msra.mxu0 %v474
        %478 = vmatprep.subr.mxu0 0.0
        %479 = vmatpush1.xpose.msra.mxu0 0.0
        %480 = vmatprep.subr.mxu0 0.0
        %481 = vmatpush1.xpose.msra.mxu0 0.0
        %482 = vmatprep.subr.mxu0 0.0
        %483 = vmatpush1.xpose.msra.mxu0 0.0
        %484 = vmatprep.subr.mxu0 0.0
        %485 = vmatpush1.xpose.msra.mxu0 0.0
        %486 = vmatprep.subr.mxu0 0.0
        %487 = vmatpush1.xpose.msra.mxu0 0.0
        %488 = vmatprep.subr.mxu0 0.0
        %489 = vmatpush1.xpose.msra.mxu0 0.0
        %490 = vmatprep.subr.mxu0 0.0
        %491 = vmatpush1.xpose.msra.mxu0 0.0
        %492 = vmatprep.subr.mxu0 0.0
        %493 = vmatpush1.xpose.msra.mxu0 0.0
        %494 = vmatprep.subr.mxu0 0.0
        %495 = vmatpush1.xpose.msra.mxu0 0.0
        %496 = vmatprep.subr.mxu0 0.0
        %497 = vmatpush1.xpose.msra.mxu0 0.0
        %498 = vmatprep.subr.mxu0 0.0
        %499 = vmatpush1.xpose.msra.mxu0 0.0
        %500 = vmatprep.subr.mxu0 0.0
        %501 = vmatpush1.xpose.msra.mxu0 0.0
        %502 = vmatprep.subr.mxu0 0.0
        %503 = vmatpush1.xpose.msra.mxu0 0.0
        %504 = vmatprep.subr.mxu0 0.0
        %505 = vmatpush1.xpose.msra.mxu0 0.0
        %506 = vmatprep.subr.mxu0 0.0
        %507 = vmatpush1.xpose.msra.mxu0 0.0
        %508 = vmatprep.subr.mxu0 0.0
        %509 = vmatpush1.xpose.msra.mxu0 0.0
        %510 = vmatprep.subr.mxu0 0.0
        %511 = vmatpush1.xpose.msra.mxu0 0.0
        %512 = vmatprep.subr.mxu0 0.0
        %513 = vmatpush1.xpose.msra.mxu0 0.0
        %514 = vmatprep.subr.mxu0 0.0
        %515 = vmatpush1.xpose.msra.mxu0 0.0
        %516 = vmatprep.subr.mxu0 0.0
        %517 = vmatpush1.xpose.msra.mxu0 0.0
        %518 = vmatprep.subr.mxu0 0.0
        %519 = vmatpush1.xpose.msra.mxu0 0.0
        %520 = vmatprep.subr.mxu0 0.0
        %521 = vmatpush1.xpose.msra.mxu0 0.0
        %522 = vmatprep.subr.mxu0 0.0
        %523 = vmatpush1.xpose.msra.mxu0 0.0
        %524 = vmatprep.subr.mxu0 0.0
        %525 = vmatpush1.xpose.msra.mxu0 0.0
        %526 = vmatprep.subr.mxu0 0.0
        %527 = vmatpush1.xpose.msra.mxu0 0.0
        %528 = vmatprep.subr.mxu0 0.0
        %529 = vmatpush1.xpose.msra.mxu0 0.0
        %530 = vmatprep.subr.mxu0 0.0
        %531 = vmatpush1.xpose.msra.mxu0 0.0
        %532 = vmatprep.subr.mxu0 0.0
        %533 = vmatpush1.xpose.msra.mxu0 0.0
        %534 = vmatprep.subr.mxu0 0.0
        %535 = vmatpush1.xpose.msra.mxu0 0.0
        %536 = vmatprep.subr.mxu0 0.0
        %537 = vmatpush1.xpose.msra.mxu0 0.0
        %538 = vmatprep.subr.mxu0 0.0
        %539 = vmatpush1.xpose.msra.mxu0 0.0
        %540 = vmatprep.mubr.f32.mxu0 0.0
        %541 = vmatmul.mubr.f32.gmra.mrb[0].mxu0 %v471
        %v542 = vpop.f32.mrb[0].mxu0
        %v543 = vadd.f32 0.0, %v542
        %v544 = vpop.f32.mrb[0].mxu0
        %545 = vdwg.mxu0
        %v547 = vsel %vm393, %v379, 0
        %v550 = vsel %vm393, %v383, 0
        %552 = vmatprep.subr.mxu0 0.0
        %553 = vmatpush1.xpose.msra.mxu0 %v550
        %554 = vmatprep.subr.mxu0 0.0
        %555 = vmatpush1.xpose.msra.mxu0 0.0
        %556 = vmatprep.subr.mxu0 0.0
        %557 = vmatpush1.xpose.msra.mxu0 0.0
        %558 = vmatprep.subr.mxu0 0.0
        %559 = vmatpush1.xpose.msra.mxu0 0.0
        %560 = vmatprep.subr.mxu0 0.0
        %561 = vmatpush1.xpose.msra.mxu0 0.0
        %562 = vmatprep.subr.mxu0 0.0
        %563 = vmatpush1.xpose.msra.mxu0 0.0
        %564 = vmatprep.subr.mxu0 0.0
        %565 = vmatpush1.xpose.msra.mxu0 0.0
        %566 = vmatprep.subr.mxu0 0.0
        %567 = vmatpush1.xpose.msra.mxu0 0.0
        %568 = vmatprep.subr.mxu0 0.0
        %569 = vmatpush1.xpose.msra.mxu0 0.0
        %570 = vmatprep.subr.mxu0 0.0
        %571 = vmatpush1.xpose.msra.mxu0 0.0
        %572 = vmatprep.subr.mxu0 0.0
        %573 = vmatpush1.xpose.msra.mxu0 0.0
        %574 = vmatprep.subr.mxu0 0.0
        %575 = vmatpush1.xpose.msra.mxu0 0.0
        %576 = vmatprep.subr.mxu0 0.0
        %577 = vmatpush1.xpose.msra.mxu0 0.0
        %578 = vmatprep.subr.mxu0 0.0
        %579 = vmatpush1.xpose.msra.mxu0 0.0
        %580 = vmatprep.subr.mxu0 0.0
        %581 = vmatpush1.xpose.msra.mxu0 0.0
        %582 = vmatprep.subr.mxu0 0.0
        %583 = vmatpush1.xpose.msra.mxu0 0.0
        %584 = vmatprep.subr.mxu0 0.0
        %585 = vmatpush1.xpose.msra.mxu0 0.0
        %586 = vmatprep.subr.mxu0 0.0
        %587 = vmatpush1.xpose.msra.mxu0 0.0
        %588 = vmatprep.subr.mxu0 0.0
        %589 = vmatpush1.xpose.msra.mxu0 0.0
        %590 = vmatprep.subr.mxu0 0.0
        %591 = vmatpush1.xpose.msra.mxu0 0.0
        %592 = vmatprep.subr.mxu0 0.0
        %593 = vmatpush1.xpose.msra.mxu0 0.0
        %594 = vmatprep.subr.mxu0 0.0
        %595 = vmatpush1.xpose.msra.mxu0 0.0
        %596 = vmatprep.subr.mxu0 0.0
        %597 = vmatpush1.xpose.msra.mxu0 0.0
        %598 = vmatprep.subr.mxu0 0.0
        %599 = vmatpush1.xpose.msra.mxu0 0.0
        %600 = vmatprep.subr.mxu0 0.0
        %601 = vmatpush1.xpose.msra.mxu0 0.0
        %602 = vmatprep.subr.mxu0 0.0
        %603 = vmatpush1.xpose.msra.mxu0 0.0
        %604 = vmatprep.subr.mxu0 0.0
        %605 = vmatpush1.xpose.msra.mxu0 0.0
        %606 = vmatprep.subr.mxu0 0.0
        %607 = vmatpush1.xpose.msra.mxu0 0.0
        %608 = vmatprep.subr.mxu0 0.0
        %609 = vmatpush1.xpose.msra.mxu0 0.0
        %610 = vmatprep.subr.mxu0 0.0
        %611 = vmatpush1.xpose.msra.mxu0 0.0
        %612 = vmatprep.subr.mxu0 0.0
        %613 = vmatpush1.xpose.msra.mxu0 0.0
        %614 = vmatprep.subr.mxu0 0.0
        %615 = vmatpush1.xpose.msra.mxu0 0.0
        %616 = vmatprep.mubr.f32.mxu0 0.0
        %617 = vmatmul.mubr.f32.gmra.mrb[0].mxu0 %v547
        %v618 = vpop.f32.mrb[0].mxu0
        %v619 = vadd.f32 0.0, %v618
        %v620 = vpop.f32.mrb[0].mxu0
        %621 = vdwg.mxu0
        %v623 = vsel %vm393, %v380, 0
        %v626 = vsel %vm393, %v384, 0
        %628 = vmatprep.subr.mxu0 0.0
        %629 = vmatpush1.xpose.msra.mxu0 %v626
        %630 = vmatprep.subr.mxu0 0.0
        %631 = vmatpush1.xpose.msra.mxu0 0.0
        %632 = vmatprep.subr.mxu0 0.0
        %633 = vmatpush1.xpose.msra.mxu0 0.0
        %634 = vmatprep.subr.mxu0 0.0
        %635 = vmatpush1.xpose.msra.mxu0 0.0
        %636 = vmatprep.subr.mxu0 0.0
        %637 = vmatpush1.xpose.msra.mxu0 0.0
        %638 = vmatprep.subr.mxu0 0.0
        %639 = vmatpush1.xpose.msra.mxu0 0.0
        %640 = vmatprep.subr.mxu0 0.0
        %641 = vmatpush1.xpose.msra.mxu0 0.0
        %642 = vmatprep.subr.mxu0 0.0
        %643 = vmatpush1.xpose.msra.mxu0 0.0
        %644 = vmatprep.subr.mxu0 0.0
        %645 = vmatpush1.xpose.msra.mxu0 0.0
        %646 = vmatprep.subr.mxu0 0.0
        %647 = vmatpush1.xpose.msra.mxu0 0.0
        %648 = vmatprep.subr.mxu0 0.0
        %649 = vmatpush1.xpose.msra.mxu0 0.0
        %650 = vmatprep.subr.mxu0 0.0
        %651 = vmatpush1.xpose.msra.mxu0 0.0
        %652 = vmatprep.subr.mxu0 0.0
        %653 = vmatpush1.xpose.msra.mxu0 0.0
        %654 = vmatprep.subr.mxu0 0.0
        %655 = vmatpush1.xpose.msra.mxu0 0.0
        %656 = vmatprep.subr.mxu0 0.0
        %657 = vmatpush1.xpose.msra.mxu0 0.0
        %658 = vmatprep.subr.mxu0 0.0
        %659 = vmatpush1.xpose.msra.mxu0 0.0
        %660 = vmatprep.subr.mxu0 0.0
        %661 = vmatpush1.xpose.msra.mxu0 0.0
        %662 = vmatprep.subr.mxu0 0.0
        %663 = vmatpush1.xpose.msra.mxu0 0.0
        %664 = vmatprep.subr.mxu0 0.0
        %665 = vmatpush1.xpose.msra.mxu0 0.0
        %666 = vmatprep.subr.mxu0 0.0
        %667 = vmatpush1.xpose.msra.mxu0 0.0
        %668 = vmatprep.subr.mxu0 0.0
        %669 = vmatpush1.xpose.msra.mxu0 0.0
        %670 = vmatprep.subr.mxu0 0.0
        %671 = vmatpush1.xpose.msra.mxu0 0.0
        %672 = vmatprep.subr.mxu0 0.0
        %673 = vmatpush1.xpose.msra.mxu0 0.0
        %674 = vmatprep.subr.mxu0 0.0
        %675 = vmatpush1.xpose.msra.mxu0 0.0
        %676 = vmatprep.subr.mxu0 0.0
        %677 = vmatpush1.xpose.msra.mxu0 0.0
        %678 = vmatprep.subr.mxu0 0.0
        %679 = vmatpush1.xpose.msra.mxu0 0.0
        %680 = vmatprep.subr.mxu0 0.0
        %681 = vmatpush1.xpose.msra.mxu0 0.0
        %682 = vmatprep.subr.mxu0 0.0
        %683 = vmatpush1.xpose.msra.mxu0 0.0
        %684 = vmatprep.subr.mxu0 0.0
        %685 = vmatpush1.xpose.msra.mxu0 0.0
        %686 = vmatprep.subr.mxu0 0.0
        %687 = vmatpush1.xpose.msra.mxu0 0.0
        %688 = vmatprep.subr.mxu0 0.0
        %689 = vmatpush1.xpose.msra.mxu0 0.0
        %690 = vmatprep.subr.mxu0 0.0
        %691 = vmatpush1.xpose.msra.mxu0 0.0
        %692 = vmatprep.mubr.f32.mxu0 0.0
        %693 = vmatmul.mubr.f32.gmra.mrb[0].mxu0 %v623
        %v694 = vpop.f32.mrb[0].mxu0
        %v695 = vadd.f32 0.0, %v694
        %v696 = vpop.f32.mrb[0].mxu0
        %697 = vdwg.mxu0
        %v698 = vmul.f32 %v467, 0.17677669
        %v699 = vmul.f32 %v543, 0.17677669
        %v700 = vmul.f32 %v619, 0.17677669
        %v701 = vmul.f32 %v695, 0.17677669
        %v702 = vadd.f32 %v698, %v389
        %v703 = vadd.f32 %v699, %v390
        %v704 = vadd.f32 %v700, %v391
        %v705 = vadd.f32 %v701, %v392
        %vm706 = vcmask 64512
        %v707 = vsel %vm706, %v702, -inf
        %708 = vmax.xlane.f32.xlu0 %v707
        %v709 = vpop.xlane.xlu0 %708
        %v710 = vsel %vm706, %v703, -inf
        %711 = vmax.xlane.f32.xlu0 %v710
        %v712 = vpop.xlane.xlu0 %711
        %v713 = vsel %vm706, %v704, -inf
        %714 = vmax.xlane.f32.xlu0 %v713
        %v715 = vpop.xlane.xlu0 %714
        %v716 = vsel %vm706, %v705, -inf
        %717 = vmax.xlane.f32.xlu0 %v716
        %v718 = vpop.xlane.xlu0 %717
        %v719 = vsub.f32 %v702, %v709
        %v720 = vsub.f32 %v703, %v712
        %v721 = vsub.f32 %v704, %v715
        %v722 = vsub.f32 %v705, %v718
        %v723 = vmul.f32 %v719, 1.442695
        %v724 = vpow.pop %v723
        %v725 = vmul.f32 %v720, 1.442695
        %v726 = vpow.pop %v725
        %v727 = vmul.f32 %v721, 1.442695
        %v728 = vpow.pop %v727
        %v729 = vmul.f32 %v722, 1.442695
        %v730 = vpow.pop %v729
        %v731 = vsel %vm706, %v724, 0.0
        %732 = vadd.xlane.f32.xlu0 %v731
        %v733 = vpop.xlane.xlu0 %732
        %v734 = vsel %vm706, %v726, 0.0
        %735 = vadd.xlane.f32.xlu0 %v734
        %v736 = vpop.xlane.xlu0 %735
        %v737 = vsel %vm706, %v728, 0.0
        %738 = vadd.xlane.f32.xlu0 %v737
        %v739 = vpop.xlane.xlu0 %738
        %v740 = vsel %vm706, %v730, 0.0
        %741 = vadd.xlane.f32.xlu0 %v740
        %v742 = vpop.xlane.xlu0 %741
        %v743 = vrcp.pop %v733
        %v744 = vrcp.pop %v736
        %v745 = vrcp.pop %v739
        %v746 = vrcp.pop %v742
        %v747 = vmul.f32 %v724, %v743
        %v748 = vmul.f32 %v726, %v744
        %v749 = vmul.f32 %v728, %v745
        %v750 = vmul.f32 %v730, %v746
        %v752 = vsel %vm706, %v747, 0
        %754 = vmatprep.subr.mxu0 0.0
        %755 = vmatpush1.msra.mxu0 %v385
        %756 = vmatprep.subr.mxu0 0.0
        %757 = vmatpush1.msra.mxu0 0.0
        %758 = vmatprep.subr.mxu0 0.0
        %759 = vmatpush1.msra.mxu0 0.0
        %760 = vmatprep.subr.mxu0 0.0
        %761 = vmatpush1.msra.mxu0 0.0
        %762 = vmatprep.subr.mxu0 0.0
        %763 = vmatpush1.msra.mxu0 0.0
        %764 = vmatprep.subr.mxu0 0.0
        %765 = vmatpush1.msra.mxu0 0.0
        %766 = vmatprep.subr.mxu0 0.0
        %767 = vmatpush1.msra.mxu0 0.0
        %768 = vmatprep.subr.mxu0 0.0
        %769 = vmatpush1.msra.mxu0 0.0
        %770 = vmatprep.subr.mxu0 0.0
        %771 = vmatpush1.msra.mxu0 0.0
        %772 = vmatprep.subr.mxu0 0.0
        %773 = vmatpush1.msra.mxu0 0.0
        %774 = vmatprep.subr.mxu0 0.0
        %775 = vmatpush1.msra.mxu0 0.0
        %776 = vmatprep.subr.mxu0 0.0
        %777 = vmatpush1.msra.mxu0 0.0
        %778 = vmatprep.subr.mxu0 0.0
        %779 = vmatpush1.msra.mxu0 0.0
        %780 = vmatprep.subr.mxu0 0.0
        %781 = vmatpush1.msra.mxu0 0.0
        %782 = vmatprep.subr.mxu0 0.0
        %783 = vmatpush1.msra.mxu0 0.0
        %784 = vmatprep.subr.mxu0 0.0
        %785 = vmatpush1.msra.mxu0 0.0
        %786 = vmatprep.subr.mxu0 0.0
        %787 = vmatpush1.msra.mxu0 0.0
        %788 = vmatprep.subr.mxu0 0.0
        %789 = vmatpush1.msra.mxu0 0.0
        %790 = vmatprep.subr.mxu0 0.0
        %791 = vmatpush1.msra.mxu0 0.0
        %792 = vmatprep.subr.mxu0 0.0
        %793 = vmatpush1.msra.mxu0 0.0
        %794 = vmatprep.subr.mxu0 0.0
        %795 = vmatpush1.msra.mxu0 0.0
        %796 = vmatprep.subr.mxu0 0.0
        %797 = vmatpush1.msra.mxu0 0.0
        %798 = vmatprep.subr.mxu0 0.0
        %799 = vmatpush1.msra.mxu0 0.0
        %800 = vmatprep.subr.mxu0 0.0
        %801 = vmatpush1.msra.mxu0 0.0
        %802 = vmatprep.subr.mxu0 0.0
        %803 = vmatpush1.msra.mxu0 0.0
        %804 = vmatprep.subr.mxu0 0.0
        %805 = vmatpush1.msra.mxu0 0.0
        %806 = vmatprep.subr.mxu0 0.0
        %807 = vmatpush1.msra.mxu0 0.0
        %808 = vmatprep.subr.mxu0 0.0
        %809 = vmatpush1.msra.mxu0 0.0
        %810 = vmatprep.subr.mxu0 0.0
        %811 = vmatpush1.msra.mxu0 0.0
        %812 = vmatprep.subr.mxu0 0.0
        %813 = vmatpush1.msra.mxu0 0.0
        %814 = vmatprep.subr.mxu0 0.0
        %815 = vmatpush1.msra.mxu0 0.0
        %816 = vmatprep.subr.mxu0 0.0
        %817 = vmatpush1.msra.mxu0 0.0
        %818 = vmatprep.mubr.f32.mxu0 0.0
        %819 = vmatmul.mubr.f32.gmra.mrb[0].mxu0 %v752
        %v820 = vpop.f32.mrb[0].mxu0
        %v821 = vadd.f32 0.0, %v820
        %v822 = vpop.f32.mrb[0].mxu0
        %823 = vdwg.mxu0
        %v825 = vsel %vm706, %v748, 0
        %827 = vmatprep.subr.mxu0 0.0
        %828 = vmatpush1.msra.mxu0 %v386
        %829 = vmatprep.subr.mxu0 0.0
        %830 = vmatpush1.msra.mxu0 0.0
        %831 = vmatprep.subr.mxu0 0.0
        %832 = vmatpush1.msra.mxu0 0.0
        %833 = vmatprep.subr.mxu0 0.0
        %834 = vmatpush1.msra.mxu0 0.0
        %835 = vmatprep.subr.mxu0 0.0
        %836 = vmatpush1.msra.mxu0 0.0
        %837 = vmatprep.subr.mxu0 0.0
        %838 = vmatpush1.msra.mxu0 0.0
        %839 = vmatprep.subr.mxu0 0.0
        %840 = vmatpush1.msra.mxu0 0.0
        %841 = vmatprep.subr.mxu0 0.0
        %842 = vmatpush1.msra.mxu0 0.0
        %843 = vmatprep.subr.mxu0 0.0
        %844 = vmatpush1.msra.mxu0 0.0
        %845 = vmatprep.subr.mxu0 0.0
        %846 = vmatpush1.msra.mxu0 0.0
        %847 = vmatprep.subr.mxu0 0.0
        %848 = vmatpush1.msra.mxu0 0.0
        %849 = vmatprep.subr.mxu0 0.0
        %850 = vmatpush1.msra.mxu0 0.0
        %851 = vmatprep.subr.mxu0 0.0
        %852 = vmatpush1.msra.mxu0 0.0
        %853 = vmatprep.subr.mxu0 0.0
        %854 = vmatpush1.msra.mxu0 0.0
        %855 = vmatprep.subr.mxu0 0.0
        %856 = vmatpush1.msra.mxu0 0.0
        %857 = vmatprep.subr.mxu0 0.0
        %858 = vmatpush1.msra.mxu0 0.0
        %859 = vmatprep.subr.mxu0 0.0
        %860 = vmatpush1.msra.mxu0 0.0
        %861 = vmatprep.subr.mxu0 0.0
        %862 = vmatpush1.msra.mxu0 0.0
        %863 = vmatprep.subr.mxu0 0.0
        %864 = vmatpush1.msra.mxu0 0.0
        %865 = vmatprep.subr.mxu0 0.0
        %866 = vmatpush1.msra.mxu0 0.0
        %867 = vmatprep.subr.mxu0 0.0
        %868 = vmatpush1.msra.mxu0 0.0
        %869 = vmatprep.subr.mxu0 0.0
        %870 = vmatpush1.msra.mxu0 0.0
        %871 = vmatprep.subr.mxu0 0.0
        %872 = vmatpush1.msra.mxu0 0.0
        %873 = vmatprep.subr.mxu0 0.0
        %874 = vmatpush1.msra.mxu0 0.0
        %875 = vmatprep.subr.mxu0 0.0
        %876 = vmatpush1.msra.mxu0 0.0
        %877 = vmatprep.subr.mxu0 0.0
        %878 = vmatpush1.msra.mxu0 0.0
        %879 = vmatprep.subr.mxu0 0.0
        %880 = vmatpush1.msra.mxu0 0.0
        %881 = vmatprep.subr.mxu0 0.0
        %882 = vmatpush1.msra.mxu0 0.0
        %883 = vmatprep.subr.mxu0 0.0
        %884 = vmatpush1.msra.mxu0 0.0
        %885 = vmatprep.subr.mxu0 0.0
        %886 = vmatpush1.msra.mxu0 0.0
        %887 = vmatprep.subr.mxu0 0.0
        %888 = vmatpush1.msra.mxu0 0.0
        %889 = vmatprep.subr.mxu0 0.0
        %890 = vmatpush1.msra.mxu0 0.0
        %891 = vmatprep.mubr.f32.mxu0 0.0
        %892 = vmatmul.mubr.f32.gmra.mrb[0].mxu0 %v825
        %v893 = vpop.f32.mrb[0].mxu0
        %v894 = vadd.f32 0.0, %v893
        %v895 = vpop.f32.mrb[0].mxu0
        %896 = vdwg.mxu0
        %v898 = vsel %vm706, %v749, 0
        %900 = vmatprep.subr.mxu0 0.0
        %901 = vmatpush1.msra.mxu0 %v387
        %902 = vmatprep.subr.mxu0 0.0
        %903 = vmatpush1.msra.mxu0 0.0
        %904 = vmatprep.subr.mxu0 0.0
        %905 = vmatpush1.msra.mxu0 0.0
        %906 = vmatprep.subr.mxu0 0.0
        %907 = vmatpush1.msra.mxu0 0.0
        %908 = vmatprep.subr.mxu0 0.0
        %909 = vmatpush1.msra.mxu0 0.0
        %910 = vmatprep.subr.mxu0 0.0
        %911 = vmatpush1.msra.mxu0 0.0
        %912 = vmatprep.subr.mxu0 0.0
        %913 = vmatpush1.msra.mxu0 0.0
        %914 = vmatprep.subr.mxu0 0.0
        %915 = vmatpush1.msra.mxu0 0.0
        %916 = vmatprep.subr.mxu0 0.0
        %917 = vmatpush1.msra.mxu0 0.0
        %918 = vmatprep.subr.mxu0 0.0
        %919 = vmatpush1.msra.mxu0 0.0
        %920 = vmatprep.subr.mxu0 0.0
        %921 = vmatpush1.msra.mxu0 0.0
        %922 = vmatprep.subr.mxu0 0.0
        %923 = vmatpush1.msra.mxu0 0.0
        %924 = vmatprep.subr.mxu0 0.0
        %925 = vmatpush1.msra.mxu0 0.0
        %926 = vmatprep.subr.mxu0 0.0
        %927 = vmatpush1.msra.mxu0 0.0
        %928 = vmatprep.subr.mxu0 0.0
        %929 = vmatpush1.msra.mxu0 0.0
        %930 = vmatprep.subr.mxu0 0.0
        %931 = vmatpush1.msra.mxu0 0.0
        %932 = vmatprep.subr.mxu0 0.0
        %933 = vmatpush1.msra.mxu0 0.0
        %934 = vmatprep.subr.mxu0 0.0
        %935 = vmatpush1.msra.mxu0 0.0
        %936 = vmatprep.subr.mxu0 0.0
        %937 = vmatpush1.msra.mxu0 0.0
        %938 = vmatprep.subr.mxu0 0.0
        %939 = vmatpush1.msra.mxu0 0.0
        %940 = vmatprep.subr.mxu0 0.0
        %941 = vmatpush1.msra.mxu0 0.0
        %942 = vmatprep.subr.mxu0 0.0
        %943 = vmatpush1.msra.mxu0 0.0
        %944 = vmatprep.subr.mxu0 0.0
        %945 = vmatpush1.msra.mxu0 0.0
        %946 = vmatprep.subr.mxu0 0.0
        %947 = vmatpush1.msra.mxu0 0.0
        %948 = vmatprep.subr.mxu0 0.0
        %949 = vmatpush1.msra.mxu0 0.0
        %950 = vmatprep.subr.mxu0 0.0
        %951 = vmatpush1.msra.mxu0 0.0
        %952 = vmatprep.subr.mxu0 0.0
        %953 = vmatpush1.msra.mxu0 0.0
        %954 = vmatprep.subr.mxu0 0.0
        %955 = vmatpush1.msra.mxu0 0.0
        %956 = vmatprep.subr.mxu0 0.0
        %957 = vmatpush1.msra.mxu0 0.0
        %958 = vmatprep.subr.mxu0 0.0
        %959 = vmatpush1.msra.mxu0 0.0
        %960 = vmatprep.subr.mxu0 0.0
        %961 = vmatpush1.msra.mxu0 0.0
        %962 = vmatprep.subr.mxu0 0.0
        %963 = vmatpush1.msra.mxu0 0.0
        %964 = vmatprep.mubr.f32.mxu0 0.0
        %965 = vmatmul.mubr.f32.gmra.mrb[0].mxu0 %v898
        %v966 = vpop.f32.mrb[0].mxu0
        %v967 = vadd.f32 0.0, %v966
        %v968 = vpop.f32.mrb[0].mxu0
        %969 = vdwg.mxu0
        %v971 = vsel %vm706, %v750, 0
        %973 = vmatprep.subr.mxu0 0.0
        %974 = vmatpush1.msra.mxu0 %v388
        %975 = vmatprep.subr.mxu0 0.0
        %976 = vmatpush1.msra.mxu0 0.0
        %977 = vmatprep.subr.mxu0 0.0
        %978 = vmatpush1.msra.mxu0 0.0
        %979 = vmatprep.subr.mxu0 0.0
        %980 = vmatpush1.msra.mxu0 0.0
        %981 = vmatprep.subr.mxu0 0.0
        %982 = vmatpush1.msra.mxu0 0.0
        %983 = vmatprep.subr.mxu0 0.0
        %984 = vmatpush1.msra.mxu0 0.0
        %985 = vmatprep.subr.mxu0 0.0
        %986 = vmatpush1.msra.mxu0 0.0
        %987 = vmatprep.subr.mxu0 0.0
        %988 = vmatpush1.msra.mxu0 0.0
        %989 = vmatprep.subr.mxu0 0.0
        %990 = vmatpush1.msra.mxu0 0.0
        %991 = vmatprep.subr.mxu0 0.0
        %992 = vmatpush1.msra.mxu0 0.0
        %993 = vmatprep.subr.mxu0 0.0
        %994 = vmatpush1.msra.mxu0 0.0
        %995 = vmatprep.subr.mxu0 0.0
        %996 = vmatpush1.msra.mxu0 0.0
        %997 = vmatprep.subr.mxu0 0.0
        %998 = vmatpush1.msra.mxu0 0.0
        %999 = vmatprep.subr.mxu0 0.0
        %1000 = vmatpush1.msra.mxu0 0.0
        %1001 = vmatprep.subr.mxu0 0.0
        %1002 = vmatpush1.msra.mxu0 0.0
        %1003 = vmatprep.subr.mxu0 0.0
        %1004 = vmatpush1.msra.mxu0 0.0
        %1005 = vmatprep.subr.mxu0 0.0
        %1006 = vmatpush1.msra.mxu0 0.0
        %1007 = vmatprep.subr.mxu0 0.0
        %1008 = vmatpush1.msra.mxu0 0.0
        %1009 = vmatprep.subr.mxu0 0.0
        %1010 = vmatpush1.msra.mxu0 0.0
        %1011 = vmatprep.subr.mxu0 0.0
        %1012 = vmatpush1.msra.mxu0 0.0
        %1013 = vmatprep.subr.mxu0 0.0
        %1014 = vmatpush1.msra.mxu0 0.0
        %1015 = vmatprep.subr.mxu0 0.0
        %1016 = vmatpush1.msra.mxu0 0.0
        %1017 = vmatprep.subr.mxu0 0.0
        %1018 = vmatpush1.msra.mxu0 0.0
        %1019 = vmatprep.subr.mxu0 0.0
        %1020 = vmatpush1.msra.mxu0 0.0
        %1021 = vmatprep.subr.mxu0 0.0
        %1022 = vmatpush1.msra.mxu0 0.0
        %1023 = vmatprep.subr.mxu0 0.0
        %1024 = vmatpush1.msra.mxu0 0.0
        %1025 = vmatprep.subr.mxu0 0.0
        %1026 = vmatpush1.msra.mxu0 0.0
        %1027 = vmatprep.subr.mxu0 0.0
        %1028 = vmatpush1.msra.mxu0 0.0
        %1029 = vmatprep.subr.mxu0 0.0
        %1030 = vmatpush1.msra.mxu0 0.0
        %1031 = vmatprep.subr.mxu0 0.0
        %1032 = vmatpush1.msra.mxu0 0.0
        %1033 = vmatprep.subr.mxu0 0.0
        %1034 = vmatpush1.msra.mxu0 0.0
        %1035 = vmatprep.subr.mxu0 0.0
        %1036 = vmatpush1.msra.mxu0 0.0
        %1037 = vmatprep.mubr.f32.mxu0 0.0
        %1038 = vmatmul.mubr.f32.gmra.mrb[0].mxu0 %v971
        %v1039 = vpop.f32.mrb[0].mxu0
        %v1040 = vadd.f32 0.0, %v1039
        %v1041 = vpop.f32.mrb[0].mxu0
        %1042 = vdwg.mxu0
        %1043 = vst.msk [vmem:[%s363] sm:$0xff] %vm393, %v821
        %1044 = vst.msk [vmem:[%s363 + $0x8] sm:$0xff] %vm393, %v894
        %1045 = vst.msk [vmem:[%s363 + $0x10] sm:$0xff] %vm393, %v967
        %1046 = vst.msk [vmem:[%s363 + $0x18] sm:$0xff] %vm393, %v1040
        %1047 = vst.msk [vmem:[%s370] sm:$0xff] %vm706, %v747
        %1048 = vst.msk [vmem:[%s370 + $0x8] sm:$0xff] %vm706, %v748
        %1049 = vst.msk [vmem:[%s370 + $0x10] sm:$0xff] %vm706, %v749
        %1050 = vst.msk [vmem:[%s370 + $0x18] sm:$0xff] %vm706, %v750
        %s1051 = sand.u32 %s144, 1
        %s1052 = scalar_lea.sflag [#allocation4], %s1051
        %s1053 = sand.u32 %s144, 1
        %s1054 = smul.addr %s1053, 32
        %s1055 = scalar_lea.vmem [#allocation10], %s1054
        %s1056 = sand.u32 %s170, 1
        %s1057 = scalar_lea.sflag [#allocation12], %s1056
        %s1058 = sand.u32 %s170, 1
        %s1059 = smul.addr %s1058, 32
        %s1060 = scalar_lea.vmem [#allocation11], %s1059
        // Predicated region
        $region53: #{tpu_custom_call.1} parent=35 // pred_check
          %p1061 = pneg %p154
        $region54: #{tpu_custom_call.1} parent=35 // pred_check_branch
          %1063 = sbr.rel (%p1061) target = $region56
        $region55: #{tpu_custom_call.1} parent=35 // pred_region
          %s1064 = smul.u32 4, %s32
          %s1066 = ssub.s32 512, 512
          %1067 = vsyncadd %s1052, %s1066
          %s1068 = smul.addr %s1064, 128
          %s1069 = scalar_lea.hbm %s4, %s1068
          %s1070 = sshll.u32 %s1055, 4
          %s1071 = int_to_ptr.vmem [resolvable:$true] %s1070
          %1076 = dma.vmem_to_hbm [thread:$0]  %s1071, 512, %s1069, %s1052, 128, 128, 8
        $region56: #{tpu_custom_call.1} parent=35 // pred_fallthru
          _
        // Predicated region
        $region57: #{tpu_custom_call.1} parent=35 // pred_check
          %p1077 = pneg %p180
        $region58: #{tpu_custom_call.1} parent=35 // pred_check_branch
          %1079 = sbr.rel (%p1077) target = $region60
        $region59: #{tpu_custom_call.1} parent=35 // pred_region
          %s1080 = smul.u32 4, %s32
          %s1082 = ssub.s32 512, 512
          %1083 = vsyncadd %s1057, %s1082
          %s1084 = smul.addr %s1080, 128
          %s1085 = scalar_lea.hbm %s5, %s1084
          %s1086 = sshll.u32 %s1060, 4
          %s1087 = int_to_ptr.vmem [resolvable:$true] %s1086
          %1092 = dma.vmem_to_hbm [thread:$0]  %s1087, 512, %s1085, %s1057, 128, 128, 8
        $region60: #{tpu_custom_call.1} parent=35 // pred_fallthru
          _
      $region36: #{tpu_custom_call.1} parent=5 // pred_fallthru
        _
      %p1093 = scmp.le.s32.totalorder 2, %s27
      // Predicated region
      $region61: #{tpu_custom_call.1} parent=5 // pred_check
        %p1094 = pneg %p1093
      $region62: #{tpu_custom_call.1} parent=5 // pred_check_branch
        %1096 = sbr.rel (%p1094) target = $region64
      $region63: #{tpu_custom_call.1} parent=5 // pred_region
        %s1097 = ssub.s32 %s27, 2
        // Predicated region
        $region65: #{tpu_custom_call.1} parent=63 // pred_check
          %p1098 = pneg %p160
        $region66: #{tpu_custom_call.1} parent=63 // pred_check_branch
          %1100 = sbr.rel (%p1098) target = $region68
        $region67: #{tpu_custom_call.1} parent=63 // pred_region
          %s1101 = sand.u32 %s145, 1
          %s1102 = scalar_lea.sflag [#allocation4], %s1101
          %s1103 = sand.u32 %s145, 1
          %s1104 = smul.addr %s1103, 32
          %s1105 = scalar_lea.vmem [#allocation10], %s1104
          %1106 = dma.done %s1102, 512
        $region68: #{tpu_custom_call.1} parent=63 // pred_fallthru
          _
        // Predicated region
        $region69: #{tpu_custom_call.1} parent=63 // pred_check
          %p1107 = pneg %p186
        $region70: #{tpu_custom_call.1} parent=63 // pred_check_branch
          %1109 = sbr.rel (%p1107) target = $region72
        $region71: #{tpu_custom_call.1} parent=63 // pred_region
          %s1110 = sand.u32 %s171, 1
          %s1111 = scalar_lea.sflag [#allocation12], %s1110
          %s1112 = sand.u32 %s171, 1
          %s1113 = smul.addr %s1112, 32
          %s1114 = scalar_lea.vmem [#allocation11], %s1113
          %1115 = dma.done %s1111, 512
        $region72: #{tpu_custom_call.1} parent=63 // pred_fallthru
          _
      $region64: #{tpu_custom_call.1} parent=5 // pred_fallthru
        _
    $region6: #{tpu_custom_call.1} parent=1 // loop_footer
      %s31 = sadd.s32 1, %s27
    $region7: #{tpu_custom_call.1} parent=1 // loop_footer_branch
      %26 = sbr.rel target = $region3
    $region8: #{tpu_custom_call.1} parent=1 // loop_exit
      _
    %1116 = vsyncpa [#allocation3], 1
    %s1117 = scalar_lea.sflag [#allocation3], 1
    %1118 = vsyncpa %s1117, 1
    %1119 = vsyncpa [#allocation6], 1
    %s1120 = scalar_lea.sflag [#allocation6], 1
    %1121 = vsyncpa %s1120, 1
    %1122 = vsyncpa [#allocation9], 1
    %s1123 = scalar_lea.sflag [#allocation9], 1
    %1124 = vsyncpa %s1123, 1
    %1125 = vsyncpa [#allocation4], 1
    %s1126 = scalar_lea.sflag [#allocation4], 1
    %1127 = vsyncpa %s1126, 1
    %1128 = vsyncpa [#allocation12], 1
    %s1129 = scalar_lea.sflag [#allocation12], 1
    %1130 = vsyncpa %s1129, 1

</llo_original>
